<compile_context>
chip_gen: v7x
topology: tpu7x:2x2x1
jax: 0.10.0
libtpu: 0.0.40
codegen_flags: <defaults>
</compile_context>

<pallas_src>
import jax
import jax.numpy as jnp
from jax.experimental import pallas as pl
from jax.experimental.pallas import tpu as pltpu

MAPPING = {1: 17, 2: 10, 3: 16, 4: 14, 5: 4, 6: 1, 7: 8, 8: 0, 9: 3, 10: 7, 11: 9, 12: 15}
TEACHER_ORDER = tuple(MAPPING[s] for s in range(1, 13))   # (17,10,16,14,4,1,8,0,3,7,9,15)
N_TEACHER = 18
N_STUDENT = 14


def _adapter_kernel(x_ref, o_ref):
    x = x_ref[...]                                                   # (TB, 18) f32

    # no_finding = prod_j (1 - sigmoid(x_j)) = exp(-sum_j softplus(x_j))
    softplus = jnp.maximum(x, 0.0) + jnp.log1p(jnp.exp(-jnp.abs(x)))
    no_finding = jnp.exp(-jnp.sum(softplus, axis=1, keepdims=True))  # (TB, 1)

    # Static lane permutation: build the 14-wide output with ONE concatenate of
    # static 1-wide slices (no iota, no compare/select chain on the VALU).
    pieces = [no_finding]
    pieces += [x[:, t:t + 1] for t in TEACHER_ORDER]                 # exact copies
    pieces.append(jnp.zeros_like(no_finding))                        # column 13 = 0
    o_ref[...] = jnp.concatenate(pieces, axis=1).astype(o_ref.dtype)


def teacher_output_adapter(teacher_logits, *, tile_b=2048, min_grid=4):
    """teacher_logits: (B, 18) float32 -> (B, 14) float32"""
    b = teacher_logits.shape[0]

    # Batch tile: split into >= min_grid programs (v7x megacore needs a grid
    # with multiple steps to use both TensorCores), round up to a multiple of 8
    # (sublane rule), cap at tile_b (keeps lane-padded double-buffered VMEM
    # footprint ~4 MiB, inside v5e's 16 MiB default scoped-VMEM limit).
    tb = -(-b // min_grid)                # cdiv(b, min_grid)
    tb = ((tb + 7) // 8) * 8              # multiple of 8
    tb = max(8, min(tile_b, tb))
    grid = (pl.cdiv(b, tb),)

    return pl.pallas_call(
        _adapter_kernel,
        out_shape=jax.ShapeDtypeStruct((b, N_STUDENT), jnp.float32),
        grid=grid,
        in_specs=[pl.BlockSpec((tb, N_TEACHER), lambda i: (i, 0))],
        out_specs=pl.BlockSpec((tb, N_STUDENT), lambda i: (i, 0)),
        compiler_params=pltpu.CompilerParams(
            dimension_semantics=("parallel",)),
        cost_estimate=pl.CostEstimate(
            flops=8 * b * N_TEACHER + 2 * b * N_STUDENT,
            transcendentals=2 * b * N_TEACHER + b,
            bytes_accessed=b * (N_TEACHER + N_STUDENT) * 4),
    )(teacher_logits)


def _reference(teacher_logits):
    b = teacher_logits.shape[0]
    mapped = jnp.zeros((b, N_STUDENT), dtype=jnp.float32)
    no_finding = jnp.prod(1.0 - jax.nn.sigmoid(teacher_logits), axis=1)
    mapped = mapped.at[:, 0].set(no_finding)
    for student_idx, teacher_idx in MAPPING.items():
        mapped = mapped.at[:, student_idx].set(teacher_logits[:, teacher_idx])
    mapped = mapped.at[:, 13].set(0.0)
    return mapped


def _check(batch, key):
    teacher_logits = jax.random.normal(key, (batch, N_TEACHER), dtype=jnp.float32)
    out = jax.block_until_ready(teacher_output_adapter(teacher_logits))
    ref = _reference(teacher_logits)
    assert out.shape == (batch, N_STUDENT)
    assert jnp.allclose(out, ref, atol=1e-5, rtol=1e-5), (out, ref)
    # Passthrough columns must be bit-exact copies (no MXU bf16 rounding).
    for student_idx, teacher_idx in MAPPING.items():
        assert jnp.array_equal(out[:, student_idx], teacher_logits[:, teacher_idx])
    assert jnp.array_equal(out[:, 13], jnp.zeros((batch,), jnp.float32))


if __name__ == "__main__":
    key = jax.random.PRNGKey(0)
    k0, k1 = jax.random.split(key)
    _check(2, k0)     # single-tile path
    _check(37, k1)    # multi-tile + ragged last tile path
    print("KERNEL_OK")
</pallas_src>

<mosaic_0001>
module attributes {stable_mosaic.version = 11 : i64} {
  func.func @_adapter_kernel(%arg0: i32, %arg1: memref<8x18xf32, #tpu.memory_space<vmem>>, %arg2: memref<8x14xf32, #tpu.memory_space<vmem>>) attributes {dimension_semantics = [#tpu.dimension_semantics<parallel>], iteration_bounds = array<i64: 1>, scalar_prefetch = 0 : i64, scratch_operands = 0 : i64, tpu.core_type = #tpu.core_type<tc>, window_params = [{transform_indices = @transform_0, window_bounds = array<i64: 8, 18>}, {transform_indices = @transform_1, window_bounds = array<i64: 8, 14>}]} {
    %c0 = arith.constant 0 : index
    %c0_0 = arith.constant 0 : index
    %0 = vector.load %arg1[%c0, %c0_0] : memref<8x18xf32, #tpu.memory_space<vmem>>, vector<8x18xf32>
    %cst = arith.constant 0.000000e+00 : f32
    %1 = vector.broadcast %cst : f32 to vector<8x18xf32>
    %2 = arith.maximumf %0, %1 : vector<8x18xf32>
    %3 = math.absf %0 : vector<8x18xf32>
    %cst_1 = arith.constant 0.000000e+00 : f32
    %4 = vector.broadcast %cst_1 : f32 to vector<8x18xf32>
    %5 = arith.subf %4, %3 : vector<8x18xf32>
    %6 = math.exp %5 : vector<8x18xf32>
    %7 = math.log1p %6 : vector<8x18xf32>
    %8 = arith.addf %2, %7 : vector<8x18xf32>
    %cst_2 = arith.constant dense<0.000000e+00> : vector<8xf32>
    %9 = vector.multi_reduction <add>, %8, %cst_2 [1] : vector<8x18xf32> to vector<8xf32>
    %10 = vector.shape_cast %9 : vector<8xf32> to vector<8x1xf32>
    %cst_3 = arith.constant 0.000000e+00 : f32
    %11 = vector.broadcast %cst_3 : f32 to vector<8x1xf32>
    %12 = arith.subf %11, %10 : vector<8x1xf32>
    %13 = math.exp %12 : vector<8x1xf32>
    %14 = vector.extract_strided_slice %0 {offsets = [0, 17], sizes = [8, 1], strides = [1, 1]} : vector<8x18xf32> to vector<8x1xf32>
    %15 = vector.extract_strided_slice %0 {offsets = [0, 10], sizes = [8, 1], strides = [1, 1]} : vector<8x18xf32> to vector<8x1xf32>
    %16 = vector.extract_strided_slice %0 {offsets = [0, 16], sizes = [8, 1], strides = [1, 1]} : vector<8x18xf32> to vector<8x1xf32>
    %17 = vector.extract_strided_slice %0 {offsets = [0, 14], sizes = [8, 1], strides = [1, 1]} : vector<8x18xf32> to vector<8x1xf32>
    %18 = vector.extract_strided_slice %0 {offsets = [0, 4], sizes = [8, 1], strides = [1, 1]} : vector<8x18xf32> to vector<8x1xf32>
    %19 = vector.extract_strided_slice %0 {offsets = [0, 1], sizes = [8, 1], strides = [1, 1]} : vector<8x18xf32> to vector<8x1xf32>
    %20 = vector.extract_strided_slice %0 {offsets = [0, 8], sizes = [8, 1], strides = [1, 1]} : vector<8x18xf32> to vector<8x1xf32>
    %21 = vector.extract_strided_slice %0 {offsets = [0, 0], sizes = [8, 1], strides = [1, 1]} : vector<8x18xf32> to vector<8x1xf32>
    %22 = vector.extract_strided_slice %0 {offsets = [0, 3], sizes = [8, 1], strides = [1, 1]} : vector<8x18xf32> to vector<8x1xf32>
    %23 = vector.extract_strided_slice %0 {offsets = [0, 7], sizes = [8, 1], strides = [1, 1]} : vector<8x18xf32> to vector<8x1xf32>
    %24 = vector.extract_strided_slice %0 {offsets = [0, 9], sizes = [8, 1], strides = [1, 1]} : vector<8x18xf32> to vector<8x1xf32>
    %25 = vector.extract_strided_slice %0 {offsets = [0, 15], sizes = [8, 1], strides = [1, 1]} : vector<8x18xf32> to vector<8x1xf32>
    %cst_4 = arith.constant 0.000000e+00 : f32
    %26 = vector.broadcast %cst_4 : f32 to vector<8x1xf32>
    %27 = tpu.concatenate %13, %14, %15, %16, %17, %18, %19, %20, %21, %22, %23, %24, %25, %26 in 1 : vector<8x1xf32>, vector<8x1xf32>, vector<8x1xf32>, vector<8x1xf32>, vector<8x1xf32>, vector<8x1xf32>, vector<8x1xf32>, vector<8x1xf32>, vector<8x1xf32>, vector<8x1xf32>, vector<8x1xf32>, vector<8x1xf32>, vector<8x1xf32>, vector<8x1xf32> -> vector<8x14xf32>
    %c0_5 = arith.constant 0 : index
    %c0_6 = arith.constant 0 : index
    %28 = vector.load %arg2[%c0_5, %c0_6] : memref<8x14xf32, #tpu.memory_space<vmem>>, vector<8x14xf32>
    tpu.vector_store %arg2[%c0_5, %c0_6], %27 {strides = array<i32>} : memref<8x14xf32, #tpu.memory_space<vmem>>, vector<8x14xf32>,
    return
  }
  func.func @transform_0(%arg0: i32) -> (i32, i32) {
    %c0_i32 = arith.constant 0 : i32
    %c0_i32_0 = arith.constant 0 : i32
    return %arg0, %c0_i32 : i32, i32
  }
  func.func @transform_1(%arg0: i32) -> (i32, i32) {
    %c0_i32 = arith.constant 0 : i32
    %c0_i32_0 = arith.constant 0 : i32
    return %arg0, %c0_i32 : i32, i32
  }
}

</mosaic_0001>

<llo_original>
// kernel: tpu_custom_call.1
$region0: #{tpu_custom_call.1}
  #allocation0 [shape = 'u32[]', space=smem, size = 0x4, offset = 0x4, fixed_abs, tag = 'smem constant byte address 0x4 - core index']
  #allocation1 [shape = 'u32[144,128]{1,0:T(1,128)}', space=vmem, size = 0x12000, scoped, tag = 'internal scratch']
  %s0 = inlined_call_operand.hbm [shape: f32[2,18], index: 0, kind: input, shape index: {}]
  %s1 = inlined_call_operand.hbm [shape: f32[2,14], index: 1, kind: output, shape index: {}]
  %s2 = sld [smem:[#allocation0]]
  $region18: #{tpu_custom_call.1} parent=0
    _
  %s4 = ssub.s32 1, %s2
  %s5 = scalar_select 0, %s4, %s2
  $region1: #{tpu_custom_call.1} parent=0
    #allocation2 [shape = 'u8[4096]{0}', space=vmem, size = 0x1000, scoped, tag = 'input window, operand 0, single buffered']
    #allocation3 [shape = 's32[1]{0}', space=sflag, size = 0x4, scoped, tag = 'scoped memory for tpu_custom_call.1']
    #allocation4 [shape = 's32[1]{0}', space=sflag, size = 0x4, scoped, tag = 'scoped memory for tpu_custom_call.1']
    #allocation5 [shape = 'u8[4096]{0}', space=vmem, size = 0x1000, scoped, tag = 'output window, operand 0, single buffered']
    %6 = vsyncpa [#allocation3], 0
    %7 = vsyncpa [#allocation4], 0
    // Predicated region
    $region2: #{tpu_custom_call.1} parent=1 // pred_check
      _
    $region3: #{tpu_custom_call.1} parent=1 // pred_check_branch
      %9 = sbr.rel (0) target = $region5
    $region4: #{tpu_custom_call.1} parent=1 // pred_region
      %s11 = ssub.s32 128, 32
      %12 = vsyncadd [#allocation3], %s11
      %s13 = sshll.u32 [#allocation2], 4
      %s14 = int_to_ptr.vmem [resolvable:$true] %s13
      %19 = dma.hbm_to_vmem [thread:$0]  %s0, 32, %s14, [#allocation3], 32, 32, 2
    $region5: #{tpu_custom_call.1} parent=1 // pred_fallthru
      _
    // Predicated region
    $region6: #{tpu_custom_call.1} parent=1 // pred_check
      _
    $region7: #{tpu_custom_call.1} parent=1 // pred_check_branch
      %21 = sbr.rel (0) target = $region9
    $region8: #{tpu_custom_call.1} parent=1 // pred_region
      %22 = dma.done [#allocation3], 128
    $region9: #{tpu_custom_call.1} parent=1 // pred_fallthru
      _
    %v23 = vld [vmem:[#allocation2] sm:$0xff]
    %v24 = vmax.f32 %v23, 0.0
    %v25 = vand.u32 2147483647, %v23
    %v26 = vsub.f32 0.0, %v25
    %v27 = vmul.f32 %v26, 1.442695
    %v28 = vpow.pop %v27
    %v29 = vadd.f32 %v28, 1.0
    %v30 = vlog2.pop %v29
    %v31 = vmul.f32 %v30, 0.6931472
    %v32 = vmul.f32 -0.5, %v28
    %v33 = vadd.f32 %v32, 1.0
    %v34 = vmul.f32 %v33, %v28
    %v35 = vand.u32 2147483647, %v28
    %vm36 = vcmp.lt.f32.partialorder %v35, 0.0004427343
    %v37 = vsel %vm36, %v34, %v31
    %v38 = vadd.f32 %v24, %v37
    %vm39 = vcmask 146432
    %v40 = vsel %vm39, %v38, 0.0
    %41 = vadd.xlane.f32.xlu0 %v40
    %v42 = vpop.xlane.xlu0 %41
    %v43 = vsub.f32 0.0, %v42
    %v44 = vmul.f32 %v43, 1.442695
    %v45 = vpow.pop %v44
    %47 = vrot.lane.b32.xlu0 %v23, 112
    %v48 = vpop.permute.xlu0 %47
    %50 = vrot.lane.b32.xlu0 %v23, 120
    %v51 = vpop.permute.xlu0 %50
    %53 = vrot.lane.b32.xlu0 %v23, 115
    %v54 = vpop.permute.xlu0 %53
    %56 = vrot.lane.b32.xlu0 %v23, 118
    %v57 = vpop.permute.xlu0 %56
    %59 = vrot.lane.b32.xlu0 %v23, 1
    %v60 = vpop.permute.xlu0 %59
    %62 = vrot.lane.b32.xlu0 %v23, 5
    %v63 = vpop.permute.xlu0 %62
    %65 = vrot.lane.b32.xlu0 %v23, 127
    %v66 = vpop.permute.xlu0 %65
    %68 = vrot.lane.b32.xlu0 %v23, 8
    %v69 = vpop.permute.xlu0 %68
    %71 = vrot.lane.b32.xlu0 %v23, 6
    %v72 = vpop.permute.xlu0 %71
    %74 = vrot.lane.b32.xlu0 %v23, 3
    %v75 = vpop.permute.xlu0 %74
    %77 = vrot.lane.b32.xlu0 %v23, 2
    %v78 = vpop.permute.xlu0 %77
    %80 = vrot.lane.b32.xlu0 %v23, 125
    %v81 = vpop.permute.xlu0 %80
    %vm83 = vcmask 7168
    %v84 = vsel %vm83, %v45, %v48
    %vm85 = vcmask 15360
    %v86 = vsel %vm85, %v84, %v51
    %vm87 = vcmask 23552
    %v88 = vsel %vm87, %v86, %v54
    %vm89 = vcmask 31744
    %v90 = vsel %vm89, %v88, %v57
    %vm91 = vcmask 39936
    %v92 = vsel %vm91, %v90, %v60
    %vm93 = vcmask 48128
    %v94 = vsel %vm93, %v92, %v63
    %vm95 = vcmask 56320
    %v96 = vsel %vm95, %v94, %v66
    %vm97 = vcmask 64512
    %v98 = vsel %vm97, %v96, %v69
    %vm99 = vcmask 72704
    %v100 = vsel %vm99, %v98, %v72
    %vm101 = vcmask 80896
    %v102 = vsel %vm101, %v100, %v75
    %vm103 = vcmask 89088
    %v104 = vsel %vm103, %v102, %v78
    %vm105 = vcmask 97280
    %v106 = vsel %vm105, %v104, %v81
    %vm107 = vcmask 105472
    %v108 = vsel %vm107, %v106, 0.0
    %vm109 = vcmask 113664
    %110 = vst.msk [vmem:[#allocation5] sm:$0xff] %vm109, %v108
    // Predicated region
    $region10: #{tpu_custom_call.1} parent=1 // pred_check
      _
    $region11: #{tpu_custom_call.1} parent=1 // pred_check_branch
      %112 = sbr.rel (0) target = $region13
    $region12: #{tpu_custom_call.1} parent=1 // pred_region
      %s114 = ssub.s32 128, 32
      %115 = vsyncadd [#allocation4], %s114
      %s116 = sshll.u32 [#allocation5], 4
      %s117 = int_to_ptr.vmem [resolvable:$true] %s116
      %122 = dma.vmem_to_hbm [thread:$0]  %s117, 32, %s1, [#allocation4], 32, 32, 2
    $region13: #{tpu_custom_call.1} parent=1 // pred_fallthru
      _
    // Predicated region
    $region14: #{tpu_custom_call.1} parent=1 // pred_check
      _
    $region15: #{tpu_custom_call.1} parent=1 // pred_check_branch
      %124 = sbr.rel (0) target = $region17
    $region16: #{tpu_custom_call.1} parent=1 // pred_region
      %125 = dma.done [#allocation4], 128
    $region17: #{tpu_custom_call.1} parent=1 // pred_fallthru
      _
    %126 = vsyncpa [#allocation3], 1
    %127 = vsyncpa [#allocation4], 1

</llo_original>
